<compile_context>
chip_gen: v5e
topology: v5e:2x2
jax: 0.10.0
libtpu: 0.0.40
codegen_flags: <defaults>
</compile_context>

<pallas_src>
import jax
import jax.numpy as jnp
from jax.experimental import pallas as pl
from jax.experimental.pallas import tpu as pltpu


# ----------------------------------------------------------------------------
# Future-subclass hot-path scaffold: blend-shape offsets = shapes @ shapedirs
# ----------------------------------------------------------------------------
def _blendshape_kernel(betas_ref, dirs_ref, out_ref, acc_ref):
    """Canonical tiled matmul with f32 scratch accumulation.

    Grid = (M//tm, N//tn, K//tk); K is the last axis and is marked
    "arbitrary" (sequential reduction); the output block is resident across
    the K axis and only written on the final K step.
    """
    @pl.when(pl.program_id(2) == 0)
    def _init():
        acc_ref[...] = jnp.zeros_like(acc_ref)

    acc_ref[...] += jnp.dot(
        betas_ref[...], dirs_ref[...], preferred_element_type=jnp.float32
    )

    @pl.when(pl.program_id(2) == pl.num_programs(2) - 1)
    def _finalize():
        out_ref[...] = acc_ref[...].astype(out_ref.dtype)


@jax.jit  # compile once per (shape, dtype); no re-trace per call
def blend_offsets(betas, shapedirs):
    """(B, K) @ (K, N) -> (B, N) via a tiled, pipelined Pallas matmul.

    Tile plan (shapes are static under jit):
      * tm: whole (small) batch per tile; a real subclass picks the largest
        tm fitting the scoped VMEM budget (16 MiB v5e / 32 MiB v6e; on v7x
        re-derive against 64 MiB physical VMEM and halve any v6e plan).
      * tn: lane-dense multiple of 256 (v6e/v7x MXU 2x256^2) when possible.
      * tk: blend-shape K is tiny (10), keep the contraction fully resident.
    """
    B, K = betas.shape
    K2, N = shapedirs.shape
    assert K == K2, "contraction-dim mismatch"

    tm = B
    tk = K
    tn = 256 if (N % 256 == 0) else (128 if (N % 128 == 0) else N)

    grid = (pl.cdiv(B, tm), pl.cdiv(N, tn), pl.cdiv(K, tk))

    # TODO(synk): a concrete subclass would feed bf16 operands at the MXU
    # boundary (f32 accumulation stays in the VMEM scratch) and append the
    # LBS (B,J,4,4) joint-transform stage after this matmul; the abstract
    # base class defines neither, so only the matmul scaffold is realized.
    return pl.pallas_call(
        _blendshape_kernel,
        out_shape=jax.ShapeDtypeStruct((B, N), jnp.float32),
        grid_spec=pltpu.PrefetchScalarGridSpec(
            num_scalar_prefetch=0,
            grid=grid,
            in_specs=[
                pl.BlockSpec((tm, tk), lambda i, j, k: (i, k)),
                pl.BlockSpec((tk, tn), lambda i, j, k: (k, j)),
            ],
            out_specs=pl.BlockSpec((tm, tn), lambda i, j, k: (i, j)),
            scratch_shapes=[pltpu.VMEM((tm, tn), jnp.float32)],
        ),
        compiler_params=pltpu.CompilerParams(
            dimension_semantics=("parallel", "parallel", "arbitrary"),
        ),
    )(betas, shapedirs)


# ----------------------------------------------------------------------------
# JAX/Pallas port of the abstract easymocap base Model
# ----------------------------------------------------------------------------
class Model:
    """Abstract body-model base class (forward is a no-op by design)."""

    def __init__(self) -> None:
        self.name = "custom"

    def forward(self, return_verts=True, **params):
        # Reference implementation is `pass` (returns None).  Per the perf
        # review, a no-op forward must not launch device work or host-sync.
        # A concrete subclass would call blend_offsets(...) (and LBS) here.
        return None

    def vertices(self, params, **kwargs):
        return self.forward(return_verts=True, **kwargs, **params)

    def keypoints(self, params, **kwargs):
        return self.forward(return_verts=False, **kwargs, **params)

    def transform(self, params, **kwargs):
        raise NotImplementedError


if __name__ == "__main__":
    key = jax.random.PRNGKey(0)
    k_poses, k_shapes, k_dirs = jax.random.split(key, 3)

    # Small, deterministic synthetic "body model" parameters.
    batch, n_shapes, v3 = 2, 10, 512
    params = {
        "poses": jax.random.normal(k_poses, (batch, 72), dtype=jnp.float32),
        "shapes": jax.random.normal(k_shapes, (batch, n_shapes), dtype=jnp.float32),
    }
    shapedirs = jax.random.normal(k_dirs, (n_shapes, v3), dtype=jnp.float32)

    # Base-class module API: forward returns None and launches no device work.
    model = Model()
    assert model.vertices(params) is None
    assert model.keypoints(params) is None
    try:
        model.transform(params)
        raise AssertionError("transform should raise NotImplementedError")
    except NotImplementedError:
        pass

    # Exercise the subclass hot-path scaffold (blend-shape matmul) exactly once.
    out = blend_offsets(params["shapes"], shapedirs)
    jax.block_until_ready(out)

    ref = params["shapes"] @ shapedirs
    assert out.shape == ref.shape and out.dtype == jnp.float32
    assert jnp.allclose(out, ref, rtol=1e-5, atol=1e-5)

    print("KERNEL_OK")
</pallas_src>

<mosaic_0001>
module attributes {stable_mosaic.version = 11 : i64} {
  func.func @_blendshape_kernel(%arg0: i32, %arg1: i32, %arg2: i32, %arg3: memref<2x10xf32, #tpu.memory_space<vmem>>, %arg4: memref<10x256xf32, #tpu.memory_space<vmem>>, %arg5: memref<2x256xf32, #tpu.memory_space<vmem>>, %arg6: memref<2x256xf32, #tpu.memory_space<vmem>>) attributes {dimension_semantics = [#tpu.dimension_semantics<parallel>, #tpu.dimension_semantics<parallel>, #tpu.dimension_semantics<arbitrary>], iteration_bounds = array<i64: 1, 2, 1>, scalar_prefetch = 0 : i64, scratch_operands = 1 : i64, tpu.core_type = #tpu.core_type<tc>, window_params = [{transform_indices = @transform_0, window_bounds = array<i64: 2, 10>}, {transform_indices = @transform_1, window_bounds = array<i64: 10, 256>}, {transform_indices = @transform_2, window_bounds = array<i64: 2, 256>}]} {
    %c0_i32 = arith.constant 0 : i32
    %0 = arith.cmpi eq, %arg2, %c0_i32 : i32
    %1 = arith.extui %0 : i1 to i32
    %c0_i32_0 = arith.constant 0 : i32
    %2 = arith.cmpi ne, %1, %c0_i32_0 : i32
    scf.if %2 {
      %cst_10 = arith.constant 0.000000e+00 : f32
      %12 = vector.broadcast %cst_10 : f32 to vector<2x256xf32>
      %c0_11 = arith.constant 0 : index
      %c0_12 = arith.constant 0 : index
      %13 = vector.load %arg6[%c0_11, %c0_12] : memref<2x256xf32, #tpu.memory_space<vmem>>, vector<2x256xf32>
      tpu.vector_store %arg6[%c0_11, %c0_12], %12 {strides = array<i32>} : memref<2x256xf32, #tpu.memory_space<vmem>>, vector<2x256xf32>,
    } else {
    }
    %c0 = arith.constant 0 : index
    %c0_1 = arith.constant 0 : index
    %3 = vector.load %arg6[%c0, %c0_1] : memref<2x256xf32, #tpu.memory_space<vmem>>, vector<2x256xf32>
    %c0_2 = arith.constant 0 : index
    %c0_3 = arith.constant 0 : index
    %4 = vector.load %arg3[%c0_2, %c0_3] : memref<2x10xf32, #tpu.memory_space<vmem>>, vector<2x10xf32>
    %c0_4 = arith.constant 0 : index
    %c0_5 = arith.constant 0 : index
    %5 = vector.load %arg4[%c0_4, %c0_5] : memref<10x256xf32, #tpu.memory_space<vmem>>, vector<10x256xf32>
    %cst = arith.constant dense<0.000000e+00> : vector<2x256xf32>
    %6 = tpu.matmul %4, %5, %cst {dimension_numbers = #tpu.dot_dimension_numbers<[1], [0], [0], [1], [0, 0, 1, 1], [], []>} : vector<2x10xf32>, vector<10x256xf32>, vector<2x256xf32> -> vector<2x256xf32>
    %7 = arith.addf %3, %6 : vector<2x256xf32>
    %c0_6 = arith.constant 0 : index
    %c0_7 = arith.constant 0 : index
    %8 = vector.load %arg6[%c0_6, %c0_7] : memref<2x256xf32, #tpu.memory_space<vmem>>, vector<2x256xf32>
    tpu.vector_store %arg6[%c0_6, %c0_7], %7 {strides = array<i32>} : memref<2x256xf32, #tpu.memory_space<vmem>>, vector<2x256xf32>,
    %c0_i32_8 = arith.constant 0 : i32
    %9 = arith.cmpi eq, %arg2, %c0_i32_8 : i32
    %10 = arith.extui %9 : i1 to i32
    %c0_i32_9 = arith.constant 0 : i32
    %11 = arith.cmpi ne, %10, %c0_i32_9 : i32
    scf.if %11 {
      %c0_10 = arith.constant 0 : index
      %c0_11 = arith.constant 0 : index
      %12 = vector.load %arg6[%c0_10, %c0_11] : memref<2x256xf32, #tpu.memory_space<vmem>>, vector<2x256xf32>
      %c0_12 = arith.constant 0 : index
      %c0_13 = arith.constant 0 : index
      %13 = vector.load %arg5[%c0_12, %c0_13] : memref<2x256xf32, #tpu.memory_space<vmem>>, vector<2x256xf32>
      tpu.vector_store %arg5[%c0_12, %c0_13], %12 {strides = array<i32>} : memref<2x256xf32, #tpu.memory_space<vmem>>, vector<2x256xf32>,
    } else {
    }
    return
  }
  func.func @transform_0(%arg0: i32, %arg1: i32, %arg2: i32) -> (i32, i32) {
    %c0_i32 = arith.constant 0 : i32
    return %arg0, %arg2 : i32, i32
  }
  func.func @transform_1(%arg0: i32, %arg1: i32, %arg2: i32) -> (i32, i32) {
    %c0_i32 = arith.constant 0 : i32
    return %arg2, %arg1 : i32, i32
  }
  func.func @transform_2(%arg0: i32, %arg1: i32, %arg2: i32) -> (i32, i32) {
    %c0_i32 = arith.constant 0 : i32
    return %arg0, %arg1 : i32, i32
  }
}

</mosaic_0001>

<llo_original>
// kernel: blend_offsets.1
$region0: #{blend_offsets.1}
  #allocation0 [shape = 'u32[]', space=smem, size = 0x4, offset = 0x4, fixed_abs, tag = 'smem constant byte address 0x4 - core index']
  #allocation1 [shape = 'u32[72,128]{1,0:T(1,128)}', space=vmem, size = 0x9000, scoped, tag = 'internal scratch']
  #allocation2 [shape = 'f32[2,256]{1,0:T(2,128)}', space=vmem, size = 0x800, scoped, tag = 'scratch operand']
  %s0 = inlined_call_operand.hbm [shape: f32[2,10], index: 0, kind: input, shape index: {}]
  %s1 = inlined_call_operand.hbm [shape: f32[10,512], index: 1, kind: input, shape index: {}]
  %s2 = inlined_call_operand.hbm [shape: f32[2,512], index: 2, kind: output, shape index: {}]
  %s3 = sld [smem:[#allocation0]]
  $region57: #{blend_offsets.1} parent=0
    _
  %s5 = ssub.s32 1, %s3
  %s6 = scalar_select 0, %s5, %s3
  $region1: #{blend_offsets.1} parent=0
    #allocation3 [shape = 'u8[1024]{0}', space=vmem, size = 0x400, scoped, tag = 'input window, operand 0, single buffered']
    #allocation4 [shape = 's32[2]{0}', space=sflag, size = 0x8, scoped, tag = 'scoped memory for blend_offsets.1']
    #allocation5 [shape = 's32[2]{0}', space=sflag, size = 0x8, scoped, tag = 'scoped memory for blend_offsets.1']
    #allocation6 [shape = 'u8[32768]{0}', space=vmem, size = 0x8000, scoped, tag = 'input window, operand 1']
    #allocation7 [shape = 's32[2]{0}', space=sflag, size = 0x8, scoped, tag = 'scoped memory for blend_offsets.1']
    #allocation8 [shape = 'u8[4096]{0}', space=vmem, size = 0x1000, scoped, tag = 'output window, operand 0']
    %7 = vsyncpa [#allocation4], 0
    %8 = vsyncpa [#allocation7], 0
    %s9 = scalar_lea.sflag [#allocation7], 1
    %10 = vsyncpa %s9, 0
    %11 = vsyncpa [#allocation5], 0
    %s12 = scalar_lea.sflag [#allocation5], 1
    %13 = vsyncpa %s12, 0
    loop: start=0, step=1, limit=4
    $region2: #{blend_offsets.1} parent=1 // loop_pre_header
      _
    $region3: #{blend_offsets.1} parent=1 // loop_header
      %s15 = sphi 0, %s19
      %p16 = scmp.ge.s32.totalorder %s15, 4
      %s22 = sphi 0, %s41
      %s23 = sphi 0, %s37
      %s24 = sphi 0, %s33
      %s25 = sphi 0, %s22
      %s26 = sphi 0, %s23
      %s27 = sphi 0, %s24
      %s28 = sphi 0, %s25
      %s29 = sphi 0, %s26
      %s30 = sphi 0, %s27
      %s46 = sphi 0, %s48
      %s49 = sphi 0, %s46
      %s50 = sphi 0, %s49
      %s66 = sphi 0, %s50
      %s74 = sphi 0, %s76
      %s77 = sphi 0, %s74
      %s78 = sphi 0, %s77
      %s94 = sphi 0, %s78
      %s102 = sphi 0, %s104
      %s105 = sphi 0, %s102
      %s106 = sphi 0, %s105
      %s122 = sphi 0, %s106
    $region4: #{blend_offsets.1} parent=1 // loop_header_branch
      %18 = sbr.rel (%p16) target = $region8
    $region5: #{blend_offsets.1} parent=1 // loop_body
      %s20 = ssub.s32 %s15, 1
      %s21 = ssub.s32 %s15, 2
      %s31 = sadd.s32 1, %s24
      %p32 = scmp.ge.s32.totalorder %s31, 1
      %s33 = scalar_select %p32, 0, %s31
      %s34 = sadd.s32 1, %s23
      %s35 = scalar_select %p32, %s34, %s23
      %p36 = scmp.ge.s32.totalorder %s35, 2
      %s37 = scalar_select %p36, 0, %s35
      %s38 = sadd.s32 1, %s22
      %s39 = scalar_select %p36, %s38, %s22
      %p40 = scmp.ge.s32.totalorder %s39, 1
      %s41 = scalar_select %p40, 0, %s39
      %s42 = ssub.s32 %s22, %s41
      %s43 = ssub.s32 %s24, %s33
      %s44 = sor.u32 %s42, %s43
      %p45 = scmp.eq.s32.totalorder %s44, 0
      %s47 = sadd.s32 %s46, 1
      %s48 = scalar_select %p45, %s46, %s47
      %p51 = pneg %p45
      %p52 = scmp.eq.s32.totalorder %s15, 1
      %p53 = por %p51, %p52
      %p54 = scmp.ne.s32.totalorder %s46, %s49
      %p55 = scmp.eq.s32.totalorder %s15, 0
      %p56 = por %p54, %p55
      %p57 = scmp.ne.s32.totalorder %s46, %s49
      %p58 = scmp.eq.s32.totalorder %s20, 1
      %p59 = por %p57, %p58
      %p60 = scmp.ne.s32.totalorder %s49, %s50
      %p61 = scmp.eq.s32.totalorder %s20, 0
      %p62 = por %p60, %p61
      %p63 = scmp.ne.s32.totalorder %s49, %s50
      %p64 = scmp.eq.s32.totalorder %s21, 1
      %p65 = por %p63, %p64
      %p67 = scmp.ne.s32.totalorder %s50, %s66
      %p68 = scmp.eq.s32.totalorder %s21, 0
      %p69 = por %p67, %p68
      %s70 = ssub.s32 %s24, %s33
      %s71 = ssub.s32 %s23, %s37
      %s72 = sor.u32 %s70, %s71
      %p73 = scmp.eq.s32.totalorder %s72, 0
      %s75 = sadd.s32 %s74, 1
      %s76 = scalar_select %p73, %s74, %s75
      %p79 = pneg %p73
      %p80 = scmp.eq.s32.totalorder %s15, 1
      %p81 = por %p79, %p80
      %p82 = scmp.ne.s32.totalorder %s74, %s77
      %p83 = scmp.eq.s32.totalorder %s15, 0
      %p84 = por %p82, %p83
      %p85 = scmp.ne.s32.totalorder %s74, %s77
      %p86 = scmp.eq.s32.totalorder %s20, 1
      %p87 = por %p85, %p86
      %p88 = scmp.ne.s32.totalorder %s77, %s78
      %p89 = scmp.eq.s32.totalorder %s20, 0
      %p90 = por %p88, %p89
      %p91 = scmp.ne.s32.totalorder %s77, %s78
      %p92 = scmp.eq.s32.totalorder %s21, 1
      %p93 = por %p91, %p92
      %p95 = scmp.ne.s32.totalorder %s78, %s94
      %p96 = scmp.eq.s32.totalorder %s21, 0
      %p97 = por %p95, %p96
      %s98 = ssub.s32 %s22, %s41
      %s99 = ssub.s32 %s23, %s37
      %s100 = sor.u32 %s98, %s99
      %p101 = scmp.eq.s32.totalorder %s100, 0
      %s103 = sadd.s32 %s102, 1
      %s104 = scalar_select %p101, %s102, %s103
      %p107 = pneg %p101
      %p108 = scmp.eq.s32.totalorder %s15, 1
      %p109 = por %p107, %p108
      %p110 = scmp.ne.s32.totalorder %s102, %s105
      %p111 = scmp.eq.s32.totalorder %s15, 0
      %p112 = por %p110, %p111
      %p113 = scmp.ne.s32.totalorder %s102, %s105
      %p114 = scmp.eq.s32.totalorder %s20, 1
      %p115 = por %p113, %p114
      %p116 = scmp.ne.s32.totalorder %s105, %s106
      %p117 = scmp.eq.s32.totalorder %s20, 0
      %p118 = por %p116, %p117
      %p119 = scmp.ne.s32.totalorder %s105, %s106
      %p120 = scmp.eq.s32.totalorder %s21, 1
      %p121 = por %p119, %p120
      %p123 = scmp.ne.s32.totalorder %s106, %s122
      %p124 = scmp.eq.s32.totalorder %s21, 0
      %p125 = por %p123, %p124
      %p126 = scmp.le.s32.totalorder 1, %s15
      %p127 = scmp.lt.s32.totalorder %s15, 3
      %p128 = pnand %p126, %p127
      %p129 = pneg %p128
      // Predicated region
      $region9: #{blend_offsets.1} parent=5 // pred_check
        _
      $region10: #{blend_offsets.1} parent=5 // pred_check_branch
        %131 = sbr.rel (%p128) target = $region12
      $region11: #{blend_offsets.1} parent=5 // pred_region
        %s132 = ssub.s32 %s15, 1
        // Predicated region
        $region13: #{blend_offsets.1} parent=11 // pred_check
          %p133 = pneg %p62
        $region14: #{blend_offsets.1} parent=11 // pred_check_branch
          %135 = sbr.rel (%p133) target = $region16
        $region15: #{blend_offsets.1} parent=11 // pred_region
          %137 = vsyncadd [#allocation4], 0
          %s138 = sadd.s32 %s27, %s25
          %s139 = smul.addr %s138, 2
          %s140 = scalar_lea.hbm %s0, %s139
          %s142 = sshll.u32 %s140, 4
          %s143 = int_to_ptr.hbm [resolvable:$true] %s142
          %s144 = sshll.u32 [#allocation3], 4
          %s145 = int_to_ptr.vmem [resolvable:$true] %s144
          %147 = dma.hbm_to_vmem [thread:$0]  %s143, 32, %s145, [#allocation4]
        $region16: #{blend_offsets.1} parent=11 // pred_fallthru
          _
      $region12: #{blend_offsets.1} parent=5 // pred_fallthru
        _
      %p148 = scmp.lt.s32.totalorder %s15, 2
      // Predicated region
      $region17: #{blend_offsets.1} parent=5 // pred_check
        %p149 = pneg %p148
      $region18: #{blend_offsets.1} parent=5 // pred_check_branch
        %151 = sbr.rel (%p149) target = $region20
      $region19: #{blend_offsets.1} parent=5 // pred_region
        // Predicated region
        $region21: #{blend_offsets.1} parent=19 // pred_check
          %p152 = pneg %p84
        $region22: #{blend_offsets.1} parent=19 // pred_check_branch
          %154 = sbr.rel (%p152) target = $region24
        $region23: #{blend_offsets.1} parent=19 // pred_region
          %s155 = sand.u32 %s74, 1
          %s156 = scalar_lea.sflag [#allocation7], %s155
          %s157 = sand.u32 %s74, 1
          %s158 = smul.addr %s157, 32
          %s159 = scalar_lea.vmem [#allocation6], %s158
          %s160 = smul.u32 2, %s24
          %s161 = smul.u32 2, %s23
          %163 = vsyncadd %s156, 0
          %s164 = smul.addr %s160, 4
          %s165 = sadd.s32 %s161, %s164
          %s166 = smul.addr %s165, 8
          %s167 = scalar_lea.hbm %s1, %s166
          %s168 = sshll.u32 %s167, 4
          %s169 = int_to_ptr.hbm [resolvable:$true] %s168
          %s170 = sshll.u32 %s159, 4
          %s171 = int_to_ptr.vmem [resolvable:$true] %s170
          %176 = dma.hbm_to_vmem [thread:$0]  %s169, 512, %s171, %s156, 512, 256, 16
        $region24: #{blend_offsets.1} parent=19 // pred_fallthru
          _
      $region20: #{blend_offsets.1} parent=5 // pred_fallthru
        _
      %p177 = scmp.le.s32.totalorder 1, %s15
      %p178 = scmp.lt.s32.totalorder %s15, 3
      %p179 = pnand %p177, %p178
      %p180 = pneg %p179
      // Predicated region
      $region25: #{blend_offsets.1} parent=5 // pred_check
        _
      $region26: #{blend_offsets.1} parent=5 // pred_check_branch
        %182 = sbr.rel (%p179) target = $region28
      $region27: #{blend_offsets.1} parent=5 // pred_region
        %s183 = ssub.s32 %s15, 1
        // Predicated region
        $region29: #{blend_offsets.1} parent=27 // pred_check
          %p184 = pneg %p62
        $region30: #{blend_offsets.1} parent=27 // pred_check_branch
          %186 = sbr.rel (%p184) target = $region32
        $region31: #{blend_offsets.1} parent=27 // pred_region
          %188 = dma.done [#allocation4], 32
        $region32: #{blend_offsets.1} parent=27 // pred_fallthru
          _
        %s189 = sand.u32 %s77, 1
        %s190 = scalar_lea.sflag [#allocation7], %s189
        %s191 = sand.u32 %s77, 1
        %s192 = smul.addr %s191, 32
        %s193 = scalar_lea.vmem [#allocation6], %s192
        // Predicated region
        $region33: #{blend_offsets.1} parent=27 // pred_check
          %p194 = pneg %p90
        $region34: #{blend_offsets.1} parent=27 // pred_check_branch
          %196 = sbr.rel (%p194) target = $region36
        $region35: #{blend_offsets.1} parent=27 // pred_region
          %198 = dma.done %s190, 512
        $region36: #{blend_offsets.1} parent=27 // pred_fallthru
          _
        %p199 = pneg %p62
        %p200 = pneg %p59
        %s201 = sand.u32 %s77, 1
        %s202 = scalar_lea.sflag [#allocation7], %s201
        %s203 = sand.u32 %s77, 1
        %s204 = smul.addr %s203, 32
        %s205 = scalar_lea.vmem [#allocation6], %s204
        %p206 = pneg %p90
        %p207 = pneg %p87
        %p208 = pneg %p118
        %p209 = pneg %p115
        %s210 = sand.u32 %s105, 1
        %s211 = scalar_lea.sflag [#allocation5], %s210
        %s212 = sand.u32 %s105, 1
        %s213 = smul.addr %s212, 4
        %s214 = scalar_lea.vmem [#allocation8], %s213
        %s215 = smul.u32 2, %s27
        %s216 = smul.u32 2, %s26
        %s217 = smul.u32 2, %s26
        %p218 = scmp.eq.s32.totalorder %s27, 0
        // Predicated region
        $region37: #{blend_offsets.1} parent=27 // pred_check
          %p219 = pneg %p218
        $region38: #{blend_offsets.1} parent=27 // pred_check_branch
          %221 = sbr.rel (%p219) target = $region40
        $region39: #{blend_offsets.1} parent=27 // pred_region
          %222 = vst [vmem:[#allocation2] sm:$0xf] 0.0
        $region40: #{blend_offsets.1} parent=27 // pred_fallthru
          _
        %v223 = vld [vmem:[#allocation2] sm:$0xf]
        %v224 = vld [vmem:[#allocation3] sm:$0x3]
        %v225 = vld [vmem:[%s193] sm:$0xff]
        %v226 = vld [vmem:[%s193 + $0x8] sm:$0xff]
        %v227 = vld [vmem:[%s193 + $0x10] sm:$0x3]
        %v228 = vld [vmem:[%s193 + $0x18] sm:$0x3]
        %vm229 = vcmask 80896
        %v231 = vsel %vm229, %v224, 0
        %vm233 = vcmask 1041408
        %v235 = vsel %vm233, %v227, 0
        %v238 = vsel %vm233, %v228, 0
        %240 = vmatpush.msra.mxu0 0.0
        %241 = vmatpush.msra.mxu0 0.0
        %242 = vmatpush.msra.mxu0 0.0
        %243 = vmatpush.msra.mxu0 0.0
        %244 = vmatpush.msra.mxu0 0.0
        %245 = vmatpush.msra.mxu0 0.0
        %246 = vmatpush.msra.mxu0 0.0
        %247 = vmatpush.msra.mxu0 0.0
        %248 = vmatpush.msra.mxu0 0.0
        %249 = vmatpush.msra.mxu0 0.0
        %250 = vmatpush.msra.mxu0 0.0
        %251 = vmatpush.msra.mxu0 0.0
        %252 = vmatpush.msra.mxu0 0.0
        %253 = vmatpush.msra.mxu0 0.0
        %254 = vmatpush.msra.mxu0 %v235
        %255 = vmatpush.msra.mxu0 %v225
        %256 = vmatmul.f32.gmra.mxu0 %v231
        %v257 = vpop.f32.mrf.mxu0
        %v258 = vadd.f32 0.0, %v257
        %259 = vdwg.mxu0
        %260 = vmatpush.msra.mxu0 0.0
        %261 = vmatpush.msra.mxu0 0.0
        %262 = vmatpush.msra.mxu0 0.0
        %263 = vmatpush.msra.mxu0 0.0
        %264 = vmatpush.msra.mxu0 0.0
        %265 = vmatpush.msra.mxu0 0.0
        %266 = vmatpush.msra.mxu0 0.0
        %267 = vmatpush.msra.mxu0 0.0
        %268 = vmatpush.msra.mxu0 0.0
        %269 = vmatpush.msra.mxu0 0.0
        %270 = vmatpush.msra.mxu0 0.0
        %271 = vmatpush.msra.mxu0 0.0
        %272 = vmatpush.msra.mxu0 0.0
        %273 = vmatpush.msra.mxu0 0.0
        %274 = vmatpush.msra.mxu0 %v238
        %275 = vmatpush.msra.mxu0 %v226
        %276 = vmatmul.f32.gmra.mxu0 %v231
        %v277 = vpop.f32.mrf.mxu0
        %v278 = vadd.f32 0.0, %v277
        %279 = vdwg.mxu0
        %v282 = vrot.slane %v278, 6
        %v283 = vsel %vm233, %v258, %v282
        %v285 = vadd.f32 %v223, %v283
        %286 = vst [vmem:[#allocation2] sm:$0xf] %v285
        // Predicated region
        $region41: #{blend_offsets.1} parent=27 // pred_check
          %p287 = pneg %p218
        $region42: #{blend_offsets.1} parent=27 // pred_check_branch
          %289 = sbr.rel (%p287) target = $region44
        $region43: #{blend_offsets.1} parent=27 // pred_region
          %v290 = vld [vmem:[#allocation2] sm:$0xf]
          %291 = vst [vmem:[%s214] sm:$0xf] %v290
        $region44: #{blend_offsets.1} parent=27 // pred_fallthru
          _
        %s292 = sand.u32 %s105, 1
        %s293 = scalar_lea.sflag [#allocation5], %s292
        %s294 = sand.u32 %s105, 1
        %s295 = smul.addr %s294, 4
        %s296 = scalar_lea.vmem [#allocation8], %s295
        // Predicated region
        $region45: #{blend_offsets.1} parent=27 // pred_check
          %p297 = pneg %p115
        $region46: #{blend_offsets.1} parent=27 // pred_check_branch
          %299 = sbr.rel (%p297) target = $region48
        $region47: #{blend_offsets.1} parent=27 // pred_region
          %s300 = smul.u32 2, %s26
          %302 = vsyncadd %s293, 0
          %s303 = smul.addr %s25, 4
          %s304 = sadd.s32 %s300, %s303
          %s305 = smul.addr %s304, 2
          %s306 = scalar_lea.hbm %s2, %s305
          %s308 = sshll.u32 %s296, 4
          %s309 = int_to_ptr.vmem [resolvable:$true] %s308
          %s310 = sshll.u32 %s306, 4
          %s311 = int_to_ptr.hbm [resolvable:$true] %s310
          %313 = dma.vmem_to_hbm [thread:$0]  %s309, 64, %s311, %s293
        $region48: #{blend_offsets.1} parent=27 // pred_fallthru
          _
      $region28: #{blend_offsets.1} parent=5 // pred_fallthru
        _
      %p314 = scmp.le.s32.totalorder 2, %s15
      // Predicated region
      $region49: #{blend_offsets.1} parent=5 // pred_check
        %p315 = pneg %p314
      $region50: #{blend_offsets.1} parent=5 // pred_check_branch
        %317 = sbr.rel (%p315) target = $region52
      $region51: #{blend_offsets.1} parent=5 // pred_region
        %s318 = ssub.s32 %s15, 2
        // Predicated region
        $region53: #{blend_offsets.1} parent=51 // pred_check
          %p319 = pneg %p121
        $region54: #{blend_offsets.1} parent=51 // pred_check_branch
          %321 = sbr.rel (%p319) target = $region56
        $region55: #{blend_offsets.1} parent=51 // pred_region
          %s322 = sand.u32 %s106, 1
          %s323 = scalar_lea.sflag [#allocation5], %s322
          %s324 = sand.u32 %s106, 1
          %s325 = smul.addr %s324, 4
          %s326 = scalar_lea.vmem [#allocation8], %s325
          %328 = dma.done %s323, 64
        $region56: #{blend_offsets.1} parent=51 // pred_fallthru
          _
      $region52: #{blend_offsets.1} parent=5 // pred_fallthru
        _
    $region6: #{blend_offsets.1} parent=1 // loop_footer
      %s19 = sadd.s32 1, %s15
    $region7: #{blend_offsets.1} parent=1 // loop_footer_branch
      %14 = sbr.rel target = $region3
    $region8: #{blend_offsets.1} parent=1 // loop_exit
      _
    %329 = vsyncpa [#allocation4], 1
    %s330 = scalar_lea.sflag [#allocation4], 1
    %331 = vsyncpa %s330, 1
    %332 = vsyncpa [#allocation7], 1
    %s333 = scalar_lea.sflag [#allocation7], 1
    %334 = vsyncpa %s333, 1
    %335 = vsyncpa [#allocation5], 1
    %s336 = scalar_lea.sflag [#allocation5], 1
    %337 = vsyncpa %s336, 1

</llo_original>
